<compile_context>
chip_gen: v5e
topology: v5e:2x2
jax: 0.10.0
libtpu: 0.0.40
codegen_flags: <defaults>
</compile_context>

<pallas_src>
import jax
import jax.numpy as jnp
from jax.experimental import pallas as pl
from jax.experimental.pallas import tpu as pltpu


def gru_head_kernel(x_ref, wih_ref, whrz_ref, whnlin_ref, bias_ref, out_ref):
    # x_ref: (T, Bb, E) time-major; wih_ref: (E, 3H) cols ordered [r|z|n];
    # whrz_ref: (H, 2H) cols [r|z]; whnlin_ref: (2H, H) rows [W_hh_n; W_lin^T];
    # bias_ref: (2, 3H) row0=[b_r, b_z, b_in_n], row1=[b_hn_n, b_lin, 0].
    T, Bb, E = x_ref.shape
    H = whrz_ref.shape[0]

    # ---- Phase 1 (off the serial path): fused hoisted input projection ----
    x2d = x_ref[...].reshape(T * Bb, E)
    bias0 = bias_ref[0:1, :]                                   # (1, 3H)
    gi = jnp.dot(x2d, wih_ref[...],
                 preferred_element_type=jnp.float32) + bias0   # (T*Bb, 3H)
    gi_rz = gi[:, 0:2 * H]                                     # (T*Bb, 2H)
    gi_n = gi[:, 2 * H:3 * H]                                  # (T*Bb, H)

    whrz = whrz_ref[...]                                       # (H, 2H)
    whn = whnlin_ref[0:H, :]                                   # (H, H)
    wlin = whnlin_ref[H:2 * H, :]                              # (H, H)
    bhn = bias_ref[1:2, 0:H]                                   # (1, H)
    blin = bias_ref[1:2, H:2 * H]                              # (1, H)

    # ---- Phase 2: fully unrolled recurrence (T static, tiny) --------------
    h = jnp.zeros((Bb, H), jnp.float32)
    for t in range(T):                                         # trace-time unroll
        gh_rz = jnp.dot(h, whrz, preferred_element_type=jnp.float32)
        gh_n = jnp.dot(h, whn, preferred_element_type=jnp.float32) + bhn
        rz = jax.nn.sigmoid(gi_rz[t * Bb:(t + 1) * Bb, :] + gh_rz)
        r = rz[:, 0:H]
        z = rz[:, H:2 * H]
        n = jnp.tanh(gi_n[t * Bb:(t + 1) * Bb, :] + r * gh_n)
        h = (1.0 - z) * n + z * h

    # ---- Head: Linear + Tanh on the final hidden state --------------------
    y = jnp.dot(h, wlin, preferred_element_type=jnp.float32)
    out_ref[...] = jnp.tanh(y + blin)


def users_reprz_rnn_forward(x_bte, params, *, batch_tile=8):
    """x_bte: (B, T, E) float32, batch_first like the PyTorch module.

    Returns (1, B, H), matching tanh(linear(h_n)) of the PyTorch module.
    """
    # TODO(synk): PyTorch path supports PackedSequence (variable-length
    # histories); this kernel assumes a fixed-length dense (B, T, E) input.
    # TODO(synk): serving wrappers should batch >=8 users per call to fill
    # the 8 f32 sublanes (the kernel itself is latency bound).
    B, T, E = x_bte.shape
    H = params["w_hh_rz"].shape[0]

    x_tbe = jnp.transpose(x_bte, (1, 0, 2)).astype(jnp.float32)   # time-major

    cost = pl.CostEstimate(
        flops=2 * B * T * E * 3 * H + 2 * T * B * H * 3 * H + 2 * B * H * H,
        transcendentals=3 * T * B * H + B * H,
        bytes_accessed=4 * (B * T * E + E * 3 * H + H * 2 * H
                            + 2 * H * H + 2 * 3 * H + B * H),
    )

    args = (x_tbe, params["w_ih_all"], params["w_hh_rz"],
            params["w_hn_lin"], params["biases"])

    use_grid = (B % batch_tile == 0) and (B >= 2 * batch_tile)

    if not use_grid:
        # Small batch: single invocation, no grid / pipeline machinery.
        vmem = lambda: pl.BlockSpec(memory_space=pltpu.MemorySpace.VMEM)
        out = pl.pallas_call(
            gru_head_kernel,
            out_shape=jax.ShapeDtypeStruct((B, H), jnp.float32),
            in_specs=[vmem() for _ in range(5)],
            out_specs=vmem(),
            cost_estimate=cost,
        )(*args)
    else:
        # Large batch: tile the (independent) batch axis and mark it
        # "parallel" so v7x can split the tiles across its 2 TensorCores.
        nb = B // batch_tile
        full2 = lambda shape: pl.BlockSpec(shape, lambda b: (0, 0))
        out = pl.pallas_call(
            gru_head_kernel,
            out_shape=jax.ShapeDtypeStruct((B, H), jnp.float32),
            grid_spec=pltpu.PrefetchScalarGridSpec(
                num_scalar_prefetch=0,
                grid=(nb,),
                in_specs=[
                    pl.BlockSpec((T, batch_tile, E), lambda b: (0, b, 0)),
                    full2((E, 3 * H)),
                    full2((H, 2 * H)),
                    full2((2 * H, H)),
                    full2((2, 3 * H)),
                ],
                out_specs=pl.BlockSpec((batch_tile, H), lambda b: (b, 0)),
            ),
            compiler_params=pltpu.CompilerParams(
                dimension_semantics=("parallel",)),
            cost_estimate=cost,
        )(*args)

    return out[None]  # (1, B, H)


def init_params(key, article_embedding_size, user_embedding_size):
    """PyTorch-style init, then packed into the kernel's consolidated layout."""
    E, H = article_embedding_size, user_embedding_size
    bound = 1.0 / (float(H) ** 0.5)
    ks = jax.random.split(key, 6)

    def u(k, shape):
        return jax.random.uniform(k, shape, jnp.float32, -bound, bound)

    w_ih = u(ks[0], (3 * H, E))   # PyTorch weight_ih_l0, gate order (r, z, n)
    w_hh = u(ks[1], (3 * H, H))   # PyTorch weight_hh_l0
    b_ih = u(ks[2], (3 * H,))
    b_hh = u(ks[3], (3 * H,))
    w_lin = u(ks[4], (H, H))      # PyTorch Linear.weight (out, in)
    b_lin = u(ks[5], (H,))

    # Packed layouts:
    w_ih_all = jnp.asarray(w_ih.T)                      # (E, 3H), cols [r|z|n]
    w_hh_rz = jnp.asarray(w_hh[0:2 * H].T)              # (H, 2H), cols [r|z]
    w_hn_lin = jnp.concatenate(                          # (2H, H): [W_hh_n; W_lin^T]
        [w_hh[2 * H:3 * H].T, w_lin.T], axis=0)
    # Biases: row0 = [b_r(+), b_z(+), b_in_n] (r/z fold b_ih+b_hh; n keeps
    # only b_ih here -- b_hh_n must stay inside the r*(.) term), row1 =
    # [b_hh_n, b_lin, 0].
    row0 = jnp.concatenate([b_ih[0:H] + b_hh[0:H],
                            b_ih[H:2 * H] + b_hh[H:2 * H],
                            b_ih[2 * H:3 * H]])
    row1 = jnp.concatenate([b_hh[2 * H:3 * H], b_lin,
                            jnp.zeros((H,), jnp.float32)])
    biases = jnp.stack([row0, row1], axis=0)             # (2, 3H)

    return dict(w_ih_all=w_ih_all, w_hh_rz=w_hh_rz,
                w_hn_lin=w_hn_lin, biases=biases)


def reference_forward(x_bte, p):
    """Pure-JAX reference of the PyTorch forward (GRU -> h_n -> Linear -> Tanh)."""
    B, T, E = x_bte.shape
    H = p["w_hh_rz"].shape[0]
    w_ih = p["w_ih_all"]
    w_hh_rz = p["w_hh_rz"]
    w_hh_n = p["w_hn_lin"][0:H, :]
    w_lin_t = p["w_hn_lin"][H:2 * H, :]
    b0 = p["biases"][0]
    b_hn = p["biases"][1, 0:H]
    b_lin = p["biases"][1, H:2 * H]

    def step(h, xt):
        gi = xt @ w_ih + b0                               # (B, 3H)
        rz = jax.nn.sigmoid(gi[:, 0:2 * H] + h @ w_hh_rz)
        r, z = rz[:, 0:H], rz[:, H:2 * H]
        n = jnp.tanh(gi[:, 2 * H:] + r * (h @ w_hh_n + b_hn))
        return (1.0 - z) * n + z * h, None

    h0 = jnp.zeros((B, H), jnp.float32)
    h_n, _ = jax.lax.scan(step, h0, jnp.transpose(x_bte, (1, 0, 2)))
    return jnp.tanh(h_n @ w_lin_t + b_lin)[None]


if __name__ == "__main__":
    T = 8                         # browsing-history length
    E, H = 32, 32                 # articleEmbeddingSize, userEmbeddingSize

    key = jax.random.PRNGKey(0)
    k_x, k_p, k_x2 = jax.random.split(key, 3)
    params = init_params(k_p, E, H)

    # Small batch (B=2): grid-less single-invocation path.
    x_small = jax.random.normal(k_x, (2, T, E), jnp.float32)
    y = jax.block_until_ready(users_reprz_rnn_forward(x_small, params))
    y_ref = jax.block_until_ready(reference_forward(x_small, params))
    assert y.shape == (1, 2, H)
    assert jnp.allclose(y, y_ref, atol=1e-5, rtol=1e-5)

    # Larger batch (B=16): exercises the batch-tiled "parallel" grid path
    # (lets v7x shard batch tiles across its 2 TensorCores).
    x_big = jax.random.normal(k_x2, (16, T, E), jnp.float32)
    y_big = jax.block_until_ready(users_reprz_rnn_forward(x_big, params))
    y_big_ref = jax.block_until_ready(reference_forward(x_big, params))
    assert y_big.shape == (1, 16, H)
    assert jnp.allclose(y_big, y_big_ref, atol=1e-5, rtol=1e-5)

    print("KERNEL_OK")
</pallas_src>

<mosaic_0001>
module attributes {stable_mosaic.version = 11 : i64} {
  func.func @gru_head_kernel(%arg0: memref<8x2x32xf32, #tpu.memory_space<vmem>>, %arg1: memref<32x96xf32, #tpu.memory_space<vmem>>, %arg2: memref<32x64xf32, #tpu.memory_space<vmem>>, %arg3: memref<64x32xf32, #tpu.memory_space<vmem>>, %arg4: memref<2x96xf32, #tpu.memory_space<vmem>>, %arg5: memref<2x32xf32, #tpu.memory_space<vmem>>) attributes {dimension_semantics = [], scalar_prefetch = 0 : i64, scratch_operands = 0 : i64, tpu.core_type = #tpu.core_type<tc>} {
    %c0 = arith.constant 0 : index
    %c0_0 = arith.constant 0 : index
    %c0_1 = arith.constant 0 : index
    %0 = vector.load %arg0[%c0, %c0_0, %c0_1] : memref<8x2x32xf32, #tpu.memory_space<vmem>>, vector<8x2x32xf32>
    %1 = vector.shape_cast %0 : vector<8x2x32xf32> to vector<16x32xf32>
    %c0_2 = arith.constant 0 : index
    %c0_3 = arith.constant 0 : index
    %2 = vector.load %arg4[%c0_2, %c0_3] : memref<2x96xf32, #tpu.memory_space<vmem>>, vector<1x96xf32>
    %c0_4 = arith.constant 0 : index
    %c0_5 = arith.constant 0 : index
    %3 = vector.load %arg1[%c0_4, %c0_5] : memref<32x96xf32, #tpu.memory_space<vmem>>, vector<32x96xf32>
    %cst = arith.constant dense<0.000000e+00> : vector<16x96xf32>
    %4 = tpu.matmul %1, %3, %cst {dimension_numbers = #tpu.dot_dimension_numbers<[1], [0], [0], [1], [0, 0, 1, 1], [], []>} : vector<16x32xf32>, vector<32x96xf32>, vector<16x96xf32> -> vector<16x96xf32>
    %5 = vector.broadcast %2 : vector<1x96xf32> to vector<16x96xf32>
    %6 = arith.addf %4, %5 : vector<16x96xf32>
    %7 = vector.extract_strided_slice %6 {offsets = [0, 0], sizes = [16, 64], strides = [1, 1]} : vector<16x96xf32> to vector<16x64xf32>
    %8 = vector.extract_strided_slice %6 {offsets = [0, 64], sizes = [16, 32], strides = [1, 1]} : vector<16x96xf32> to vector<16x32xf32>
    %c0_6 = arith.constant 0 : index
    %c0_7 = arith.constant 0 : index
    %9 = vector.load %arg2[%c0_6, %c0_7] : memref<32x64xf32, #tpu.memory_space<vmem>>, vector<32x64xf32>
    %c0_8 = arith.constant 0 : index
    %c0_9 = arith.constant 0 : index
    %10 = vector.load %arg3[%c0_8, %c0_9] : memref<64x32xf32, #tpu.memory_space<vmem>>, vector<32x32xf32>
    %c32 = arith.constant 32 : index
    %c0_10 = arith.constant 0 : index
    %11 = vector.load %arg3[%c32, %c0_10] : memref<64x32xf32, #tpu.memory_space<vmem>>, vector<32x32xf32>
    %c1 = arith.constant 1 : index
    %c0_11 = arith.constant 0 : index
    %12 = vector.load %arg4[%c1, %c0_11] : memref<2x96xf32, #tpu.memory_space<vmem>>, vector<1x32xf32>
    %c1_12 = arith.constant 1 : index
    %c32_13 = arith.constant 32 : index
    %13 = vector.load %arg4[%c1_12, %c32_13] : memref<2x96xf32, #tpu.memory_space<vmem>>, vector<1x32xf32>
    %cst_14 = arith.constant 0.000000e+00 : f32
    %14 = vector.broadcast %cst_14 : f32 to vector<2x32xf32>
    %cst_15 = arith.constant dense<0.000000e+00> : vector<2x64xf32>
    %15 = tpu.matmul %14, %9, %cst_15 {dimension_numbers = #tpu.dot_dimension_numbers<[1], [0], [0], [1], [0, 0, 1, 1], [], []>} : vector<2x32xf32>, vector<32x64xf32>, vector<2x64xf32> -> vector<2x64xf32>
    %cst_16 = arith.constant dense<0.000000e+00> : vector<2x32xf32>
    %16 = tpu.matmul %14, %10, %cst_16 {dimension_numbers = #tpu.dot_dimension_numbers<[1], [0], [0], [1], [0, 0, 1, 1], [], []>} : vector<2x32xf32>, vector<32x32xf32>, vector<2x32xf32> -> vector<2x32xf32>
    %17 = vector.broadcast %12 : vector<1x32xf32> to vector<2x32xf32>
    %18 = arith.addf %16, %17 : vector<2x32xf32>
    %19 = vector.extract_strided_slice %7 {offsets = [0, 0], sizes = [2, 64], strides = [1, 1]} : vector<16x64xf32> to vector<2x64xf32>
    %20 = arith.addf %19, %15 : vector<2x64xf32>
    %21 = arith.negf %20 : vector<2x64xf32>
    %22 = math.exp %21 : vector<2x64xf32>
    %cst_17 = arith.constant 1.000000e+00 : f32
    %23 = vector.broadcast %cst_17 : f32 to vector<2x64xf32>
    %24 = arith.addf %23, %22 : vector<2x64xf32>
    %25 = arith.divf %23, %24 : vector<2x64xf32>
    %26 = vector.extract_strided_slice %25 {offsets = [0, 0], sizes = [2, 32], strides = [1, 1]} : vector<2x64xf32> to vector<2x32xf32>
    %27 = vector.extract_strided_slice %25 {offsets = [0, 32], sizes = [2, 32], strides = [1, 1]} : vector<2x64xf32> to vector<2x32xf32>
    %28 = vector.extract_strided_slice %8 {offsets = [0, 0], sizes = [2, 32], strides = [1, 1]} : vector<16x32xf32> to vector<2x32xf32>
    %29 = arith.mulf %26, %18 : vector<2x32xf32>
    %30 = arith.addf %28, %29 : vector<2x32xf32>
    %31 = math.tanh %30 : vector<2x32xf32>
    %cst_18 = arith.constant 1.000000e+00 : f32
    %32 = vector.broadcast %cst_18 : f32 to vector<2x32xf32>
    %33 = arith.subf %32, %27 : vector<2x32xf32>
    %34 = arith.mulf %33, %31 : vector<2x32xf32>
    %35 = arith.mulf %27, %14 : vector<2x32xf32>
    %36 = arith.addf %34, %35 : vector<2x32xf32>
    %cst_19 = arith.constant dense<0.000000e+00> : vector<2x64xf32>
    %37 = tpu.matmul %36, %9, %cst_19 {dimension_numbers = #tpu.dot_dimension_numbers<[1], [0], [0], [1], [0, 0, 1, 1], [], []>} : vector<2x32xf32>, vector<32x64xf32>, vector<2x64xf32> -> vector<2x64xf32>
    %cst_20 = arith.constant dense<0.000000e+00> : vector<2x32xf32>
    %38 = tpu.matmul %36, %10, %cst_20 {dimension_numbers = #tpu.dot_dimension_numbers<[1], [0], [0], [1], [0, 0, 1, 1], [], []>} : vector<2x32xf32>, vector<32x32xf32>, vector<2x32xf32> -> vector<2x32xf32>
    %39 = vector.broadcast %12 : vector<1x32xf32> to vector<2x32xf32>
    %40 = arith.addf %38, %39 : vector<2x32xf32>
    %41 = vector.extract_strided_slice %7 {offsets = [2, 0], sizes = [2, 64], strides = [1, 1]} : vector<16x64xf32> to vector<2x64xf32>
    %42 = arith.addf %41, %37 : vector<2x64xf32>
    %43 = arith.negf %42 : vector<2x64xf32>
    %44 = math.exp %43 : vector<2x64xf32>
    %cst_21 = arith.constant 1.000000e+00 : f32
    %45 = vector.broadcast %cst_21 : f32 to vector<2x64xf32>
    %46 = arith.addf %45, %44 : vector<2x64xf32>
    %47 = arith.divf %45, %46 : vector<2x64xf32>
    %48 = vector.extract_strided_slice %47 {offsets = [0, 0], sizes = [2, 32], strides = [1, 1]} : vector<2x64xf32> to vector<2x32xf32>
    %49 = vector.extract_strided_slice %47 {offsets = [0, 32], sizes = [2, 32], strides = [1, 1]} : vector<2x64xf32> to vector<2x32xf32>
    %50 = vector.extract_strided_slice %8 {offsets = [2, 0], sizes = [2, 32], strides = [1, 1]} : vector<16x32xf32> to vector<2x32xf32>
    %51 = arith.mulf %48, %40 : vector<2x32xf32>
    %52 = arith.addf %50, %51 : vector<2x32xf32>
    %53 = math.tanh %52 : vector<2x32xf32>
    %cst_22 = arith.constant 1.000000e+00 : f32
    %54 = vector.broadcast %cst_22 : f32 to vector<2x32xf32>
    %55 = arith.subf %54, %49 : vector<2x32xf32>
    %56 = arith.mulf %55, %53 : vector<2x32xf32>
    %57 = arith.mulf %49, %36 : vector<2x32xf32>
    %58 = arith.addf %56, %57 : vector<2x32xf32>
    %cst_23 = arith.constant dense<0.000000e+00> : vector<2x64xf32>
    %59 = tpu.matmul %58, %9, %cst_23 {dimension_numbers = #tpu.dot_dimension_numbers<[1], [0], [0], [1], [0, 0, 1, 1], [], []>} : vector<2x32xf32>, vector<32x64xf32>, vector<2x64xf32> -> vector<2x64xf32>
    %cst_24 = arith.constant dense<0.000000e+00> : vector<2x32xf32>
    %60 = tpu.matmul %58, %10, %cst_24 {dimension_numbers = #tpu.dot_dimension_numbers<[1], [0], [0], [1], [0, 0, 1, 1], [], []>} : vector<2x32xf32>, vector<32x32xf32>, vector<2x32xf32> -> vector<2x32xf32>
    %61 = vector.broadcast %12 : vector<1x32xf32> to vector<2x32xf32>
    %62 = arith.addf %60, %61 : vector<2x32xf32>
    %63 = vector.extract_strided_slice %7 {offsets = [4, 0], sizes = [2, 64], strides = [1, 1]} : vector<16x64xf32> to vector<2x64xf32>
    %64 = arith.addf %63, %59 : vector<2x64xf32>
    %65 = arith.negf %64 : vector<2x64xf32>
    %66 = math.exp %65 : vector<2x64xf32>
    %cst_25 = arith.constant 1.000000e+00 : f32
    %67 = vector.broadcast %cst_25 : f32 to vector<2x64xf32>
    %68 = arith.addf %67, %66 : vector<2x64xf32>
    %69 = arith.divf %67, %68 : vector<2x64xf32>
    %70 = vector.extract_strided_slice %69 {offsets = [0, 0], sizes = [2, 32], strides = [1, 1]} : vector<2x64xf32> to vector<2x32xf32>
    %71 = vector.extract_strided_slice %69 {offsets = [0, 32], sizes = [2, 32], strides = [1, 1]} : vector<2x64xf32> to vector<2x32xf32>
    %72 = vector.extract_strided_slice %8 {offsets = [4, 0], sizes = [2, 32], strides = [1, 1]} : vector<16x32xf32> to vector<2x32xf32>
    %73 = arith.mulf %70, %62 : vector<2x32xf32>
    %74 = arith.addf %72, %73 : vector<2x32xf32>
    %75 = math.tanh %74 : vector<2x32xf32>
    %cst_26 = arith.constant 1.000000e+00 : f32
    %76 = vector.broadcast %cst_26 : f32 to vector<2x32xf32>
    %77 = arith.subf %76, %71 : vector<2x32xf32>
    %78 = arith.mulf %77, %75 : vector<2x32xf32>
    %79 = arith.mulf %71, %58 : vector<2x32xf32>
    %80 = arith.addf %78, %79 : vector<2x32xf32>
    %cst_27 = arith.constant dense<0.000000e+00> : vector<2x64xf32>
    %81 = tpu.matmul %80, %9, %cst_27 {dimension_numbers = #tpu.dot_dimension_numbers<[1], [0], [0], [1], [0, 0, 1, 1], [], []>} : vector<2x32xf32>, vector<32x64xf32>, vector<2x64xf32> -> vector<2x64xf32>
    %cst_28 = arith.constant dense<0.000000e+00> : vector<2x32xf32>
    %82 = tpu.matmul %80, %10, %cst_28 {dimension_numbers = #tpu.dot_dimension_numbers<[1], [0], [0], [1], [0, 0, 1, 1], [], []>} : vector<2x32xf32>, vector<32x32xf32>, vector<2x32xf32> -> vector<2x32xf32>
    %83 = vector.broadcast %12 : vector<1x32xf32> to vector<2x32xf32>
    %84 = arith.addf %82, %83 : vector<2x32xf32>
    %85 = vector.extract_strided_slice %7 {offsets = [6, 0], sizes = [2, 64], strides = [1, 1]} : vector<16x64xf32> to vector<2x64xf32>
    %86 = arith.addf %85, %81 : vector<2x64xf32>
    %87 = arith.negf %86 : vector<2x64xf32>
    %88 = math.exp %87 : vector<2x64xf32>
    %cst_29 = arith.constant 1.000000e+00 : f32
    %89 = vector.broadcast %cst_29 : f32 to vector<2x64xf32>
    %90 = arith.addf %89, %88 : vector<2x64xf32>
    %91 = arith.divf %89, %90 : vector<2x64xf32>
    %92 = vector.extract_strided_slice %91 {offsets = [0, 0], sizes = [2, 32], strides = [1, 1]} : vector<2x64xf32> to vector<2x32xf32>
    %93 = vector.extract_strided_slice %91 {offsets = [0, 32], sizes = [2, 32], strides = [1, 1]} : vector<2x64xf32> to vector<2x32xf32>
    %94 = vector.extract_strided_slice %8 {offsets = [6, 0], sizes = [2, 32], strides = [1, 1]} : vector<16x32xf32> to vector<2x32xf32>
    %95 = arith.mulf %92, %84 : vector<2x32xf32>
    %96 = arith.addf %94, %95 : vector<2x32xf32>
    %97 = math.tanh %96 : vector<2x32xf32>
    %cst_30 = arith.constant 1.000000e+00 : f32
    %98 = vector.broadcast %cst_30 : f32 to vector<2x32xf32>
    %99 = arith.subf %98, %93 : vector<2x32xf32>
    %100 = arith.mulf %99, %97 : vector<2x32xf32>
    %101 = arith.mulf %93, %80 : vector<2x32xf32>
    %102 = arith.addf %100, %101 : vector<2x32xf32>
    %cst_31 = arith.constant dense<0.000000e+00> : vector<2x64xf32>
    %103 = tpu.matmul %102, %9, %cst_31 {dimension_numbers = #tpu.dot_dimension_numbers<[1], [0], [0], [1], [0, 0, 1, 1], [], []>} : vector<2x32xf32>, vector<32x64xf32>, vector<2x64xf32> -> vector<2x64xf32>
    %cst_32 = arith.constant dense<0.000000e+00> : vector<2x32xf32>
    %104 = tpu.matmul %102, %10, %cst_32 {dimension_numbers = #tpu.dot_dimension_numbers<[1], [0], [0], [1], [0, 0, 1, 1], [], []>} : vector<2x32xf32>, vector<32x32xf32>, vector<2x32xf32> -> vector<2x32xf32>
    %105 = vector.broadcast %12 : vector<1x32xf32> to vector<2x32xf32>
    %106 = arith.addf %104, %105 : vector<2x32xf32>
    %107 = vector.extract_strided_slice %7 {offsets = [8, 0], sizes = [2, 64], strides = [1, 1]} : vector<16x64xf32> to vector<2x64xf32>
    %108 = arith.addf %107, %103 : vector<2x64xf32>
    %109 = arith.negf %108 : vector<2x64xf32>
    %110 = math.exp %109 : vector<2x64xf32>
    %cst_33 = arith.constant 1.000000e+00 : f32
    %111 = vector.broadcast %cst_33 : f32 to vector<2x64xf32>
    %112 = arith.addf %111, %110 : vector<2x64xf32>
    %113 = arith.divf %111, %112 : vector<2x64xf32>
    %114 = vector.extract_strided_slice %113 {offsets = [0, 0], sizes = [2, 32], strides = [1, 1]} : vector<2x64xf32> to vector<2x32xf32>
    %115 = vector.extract_strided_slice %113 {offsets = [0, 32], sizes = [2, 32], strides = [1, 1]} : vector<2x64xf32> to vector<2x32xf32>
    %116 = vector.extract_strided_slice %8 {offsets = [8, 0], sizes = [2, 32], strides = [1, 1]} : vector<16x32xf32> to vector<2x32xf32>
    %117 = arith.mulf %114, %106 : vector<2x32xf32>
    %118 = arith.addf %116, %117 : vector<2x32xf32>
    %119 = math.tanh %118 : vector<2x32xf32>
    %cst_34 = arith.constant 1.000000e+00 : f32
    %120 = vector.broadcast %cst_34 : f32 to vector<2x32xf32>
    %121 = arith.subf %120, %115 : vector<2x32xf32>
    %122 = arith.mulf %121, %119 : vector<2x32xf32>
    %123 = arith.mulf %115, %102 : vector<2x32xf32>
    %124 = arith.addf %122, %123 : vector<2x32xf32>
    %cst_35 = arith.constant dense<0.000000e+00> : vector<2x64xf32>
    %125 = tpu.matmul %124, %9, %cst_35 {dimension_numbers = #tpu.dot_dimension_numbers<[1], [0], [0], [1], [0, 0, 1, 1], [], []>} : vector<2x32xf32>, vector<32x64xf32>, vector<2x64xf32> -> vector<2x64xf32>
    %cst_36 = arith.constant dense<0.000000e+00> : vector<2x32xf32>
    %126 = tpu.matmul %124, %10, %cst_36 {dimension_numbers = #tpu.dot_dimension_numbers<[1], [0], [0], [1], [0, 0, 1, 1], [], []>} : vector<2x32xf32>, vector<32x32xf32>, vector<2x32xf32> -> vector<2x32xf32>
    %127 = vector.broadcast %12 : vector<1x32xf32> to vector<2x32xf32>
    %128 = arith.addf %126, %127 : vector<2x32xf32>
    %129 = vector.extract_strided_slice %7 {offsets = [10, 0], sizes = [2, 64], strides = [1, 1]} : vector<16x64xf32> to vector<2x64xf32>
    %130 = arith.addf %129, %125 : vector<2x64xf32>
    %131 = arith.negf %130 : vector<2x64xf32>
    %132 = math.exp %131 : vector<2x64xf32>
    %cst_37 = arith.constant 1.000000e+00 : f32
    %133 = vector.broadcast %cst_37 : f32 to vector<2x64xf32>
    %134 = arith.addf %133, %132 : vector<2x64xf32>
    %135 = arith.divf %133, %134 : vector<2x64xf32>
    %136 = vector.extract_strided_slice %135 {offsets = [0, 0], sizes = [2, 32], strides = [1, 1]} : vector<2x64xf32> to vector<2x32xf32>
    %137 = vector.extract_strided_slice %135 {offsets = [0, 32], sizes = [2, 32], strides = [1, 1]} : vector<2x64xf32> to vector<2x32xf32>
    %138 = vector.extract_strided_slice %8 {offsets = [10, 0], sizes = [2, 32], strides = [1, 1]} : vector<16x32xf32> to vector<2x32xf32>
    %139 = arith.mulf %136, %128 : vector<2x32xf32>
    %140 = arith.addf %138, %139 : vector<2x32xf32>
    %141 = math.tanh %140 : vector<2x32xf32>
    %cst_38 = arith.constant 1.000000e+00 : f32
    %142 = vector.broadcast %cst_38 : f32 to vector<2x32xf32>
    %143 = arith.subf %142, %137 : vector<2x32xf32>
    %144 = arith.mulf %143, %141 : vector<2x32xf32>
    %145 = arith.mulf %137, %124 : vector<2x32xf32>
    %146 = arith.addf %144, %145 : vector<2x32xf32>
    %cst_39 = arith.constant dense<0.000000e+00> : vector<2x64xf32>
    %147 = tpu.matmul %146, %9, %cst_39 {dimension_numbers = #tpu.dot_dimension_numbers<[1], [0], [0], [1], [0, 0, 1, 1], [], []>} : vector<2x32xf32>, vector<32x64xf32>, vector<2x64xf32> -> vector<2x64xf32>
    %cst_40 = arith.constant dense<0.000000e+00> : vector<2x32xf32>
    %148 = tpu.matmul %146, %10, %cst_40 {dimension_numbers = #tpu.dot_dimension_numbers<[1], [0], [0], [1], [0, 0, 1, 1], [], []>} : vector<2x32xf32>, vector<32x32xf32>, vector<2x32xf32> -> vector<2x32xf32>
    %149 = vector.broadcast %12 : vector<1x32xf32> to vector<2x32xf32>
    %150 = arith.addf %148, %149 : vector<2x32xf32>
    %151 = vector.extract_strided_slice %7 {offsets = [12, 0], sizes = [2, 64], strides = [1, 1]} : vector<16x64xf32> to vector<2x64xf32>
    %152 = arith.addf %151, %147 : vector<2x64xf32>
    %153 = arith.negf %152 : vector<2x64xf32>
    %154 = math.exp %153 : vector<2x64xf32>
    %cst_41 = arith.constant 1.000000e+00 : f32
    %155 = vector.broadcast %cst_41 : f32 to vector<2x64xf32>
    %156 = arith.addf %155, %154 : vector<2x64xf32>
    %157 = arith.divf %155, %156 : vector<2x64xf32>
    %158 = vector.extract_strided_slice %157 {offsets = [0, 0], sizes = [2, 32], strides = [1, 1]} : vector<2x64xf32> to vector<2x32xf32>
    %159 = vector.extract_strided_slice %157 {offsets = [0, 32], sizes = [2, 32], strides = [1, 1]} : vector<2x64xf32> to vector<2x32xf32>
    %160 = vector.extract_strided_slice %8 {offsets = [12, 0], sizes = [2, 32], strides = [1, 1]} : vector<16x32xf32> to vector<2x32xf32>
    %161 = arith.mulf %158, %150 : vector<2x32xf32>
    %162 = arith.addf %160, %161 : vector<2x32xf32>
    %163 = math.tanh %162 : vector<2x32xf32>
    %cst_42 = arith.constant 1.000000e+00 : f32
    %164 = vector.broadcast %cst_42 : f32 to vector<2x32xf32>
    %165 = arith.subf %164, %159 : vector<2x32xf32>
    %166 = arith.mulf %165, %163 : vector<2x32xf32>
    %167 = arith.mulf %159, %146 : vector<2x32xf32>
    %168 = arith.addf %166, %167 : vector<2x32xf32>
    %cst_43 = arith.constant dense<0.000000e+00> : vector<2x64xf32>
    %169 = tpu.matmul %168, %9, %cst_43 {dimension_numbers = #tpu.dot_dimension_numbers<[1], [0], [0], [1], [0, 0, 1, 1], [], []>} : vector<2x32xf32>, vector<32x64xf32>, vector<2x64xf32> -> vector<2x64xf32>
    %cst_44 = arith.constant dense<0.000000e+00> : vector<2x32xf32>
    %170 = tpu.matmul %168, %10, %cst_44 {dimension_numbers = #tpu.dot_dimension_numbers<[1], [0], [0], [1], [0, 0, 1, 1], [], []>} : vector<2x32xf32>, vector<32x32xf32>, vector<2x32xf32> -> vector<2x32xf32>
    %171 = vector.broadcast %12 : vector<1x32xf32> to vector<2x32xf32>
    %172 = arith.addf %170, %171 : vector<2x32xf32>
    %173 = vector.extract_strided_slice %7 {offsets = [14, 0], sizes = [2, 64], strides = [1, 1]} : vector<16x64xf32> to vector<2x64xf32>
    %174 = arith.addf %173, %169 : vector<2x64xf32>
    %175 = arith.negf %174 : vector<2x64xf32>
    %176 = math.exp %175 : vector<2x64xf32>
    %cst_45 = arith.constant 1.000000e+00 : f32
    %177 = vector.broadcast %cst_45 : f32 to vector<2x64xf32>
    %178 = arith.addf %177, %176 : vector<2x64xf32>
    %179 = arith.divf %177, %178 : vector<2x64xf32>
    %180 = vector.extract_strided_slice %179 {offsets = [0, 0], sizes = [2, 32], strides = [1, 1]} : vector<2x64xf32> to vector<2x32xf32>
    %181 = vector.extract_strided_slice %179 {offsets = [0, 32], sizes = [2, 32], strides = [1, 1]} : vector<2x64xf32> to vector<2x32xf32>
    %182 = vector.extract_strided_slice %8 {offsets = [14, 0], sizes = [2, 32], strides = [1, 1]} : vector<16x32xf32> to vector<2x32xf32>
    %183 = arith.mulf %180, %172 : vector<2x32xf32>
    %184 = arith.addf %182, %183 : vector<2x32xf32>
    %185 = math.tanh %184 : vector<2x32xf32>
    %cst_46 = arith.constant 1.000000e+00 : f32
    %186 = vector.broadcast %cst_46 : f32 to vector<2x32xf32>
    %187 = arith.subf %186, %181 : vector<2x32xf32>
    %188 = arith.mulf %187, %185 : vector<2x32xf32>
    %189 = arith.mulf %181, %168 : vector<2x32xf32>
    %190 = arith.addf %188, %189 : vector<2x32xf32>
    %cst_47 = arith.constant dense<0.000000e+00> : vector<2x32xf32>
    %191 = tpu.matmul %190, %11, %cst_47 {dimension_numbers = #tpu.dot_dimension_numbers<[1], [0], [0], [1], [0, 0, 1, 1], [], []>} : vector<2x32xf32>, vector<32x32xf32>, vector<2x32xf32> -> vector<2x32xf32>
    %192 = vector.broadcast %13 : vector<1x32xf32> to vector<2x32xf32>
    %193 = arith.addf %191, %192 : vector<2x32xf32>
    %194 = math.tanh %193 : vector<2x32xf32>
    %c0_48 = arith.constant 0 : index
    %c0_49 = arith.constant 0 : index
    %195 = vector.load %arg5[%c0_48, %c0_49] : memref<2x32xf32, #tpu.memory_space<vmem>>, vector<2x32xf32>
    tpu.vector_store %arg5[%c0_48, %c0_49], %194 {strides = array<i32>} : memref<2x32xf32, #tpu.memory_space<vmem>>, vector<2x32xf32>,
    return
  }
}

</mosaic_0001>

<llo_original>
// kernel: tpu_custom_call.1
$region0: #{tpu_custom_call.1}
  #allocation0 [shape = 'u32[]', space=smem, size = 0x4, offset = 0x4, fixed_abs, tag = 'smem constant byte address 0x4 - core index']
  #allocation1 [shape = 'u32[72,128]{1,0:T(1,128)}', space=vmem, size = 0x9000, scoped, tag = 'internal scratch']
  %s0 = inlined_call_operand.vmem [shape: f32[8,2,32], index: 0, kind: input, shape index: {}]
  %s1 = inlined_call_operand.vmem [shape: f32[32,96], index: 1, kind: input, shape index: {}]
  %s2 = inlined_call_operand.vmem [shape: f32[32,64], index: 2, kind: input, shape index: {}]
  %s3 = inlined_call_operand.vmem [shape: f32[64,32], index: 3, kind: input, shape index: {}]
  %s4 = inlined_call_operand.vmem [shape: f32[2,96], index: 4, kind: input, shape index: {}]
  %s5 = inlined_call_operand.hbm [shape: f32[2,32], index: 5, kind: output, shape index: {}]
  %s6 = sld [smem:[#allocation0]]
  $region30: #{tpu_custom_call.1} parent=0
    _
  %s8 = ssub.s32 1, %s6
  %s9 = scalar_select 0, %s8, %s6
  $region1: #{tpu_custom_call.1} parent=0
    #allocation2 [shape = 'u8[1024]{0}', space=vmem, size = 0x400, scoped, tag = 'output window, operand 0, single buffered']
    #allocation3 [shape = 's32[1]{0}', space=sflag, size = 0x4, scoped, tag = 'scoped memory for tpu_custom_call.1']
    %10 = vsyncpa [#allocation3], 0
    // Predicated region
    $region2: #{tpu_custom_call.1} parent=1 // pred_check
      _
    $region3: #{tpu_custom_call.1} parent=1 // pred_check_branch
      %12 = sbr.rel (0) target = $region5
    $region4: #{tpu_custom_call.1} parent=1 // pred_region
      _
    $region5: #{tpu_custom_call.1} parent=1 // pred_fallthru
      _
    // Predicated region
    $region6: #{tpu_custom_call.1} parent=1 // pred_check
      _
    $region7: #{tpu_custom_call.1} parent=1 // pred_check_branch
      %14 = sbr.rel (0) target = $region9
    $region8: #{tpu_custom_call.1} parent=1 // pred_region
      _
    $region9: #{tpu_custom_call.1} parent=1 // pred_fallthru
      _
    // Predicated region
    $region10: #{tpu_custom_call.1} parent=1 // pred_check
      _
    $region11: #{tpu_custom_call.1} parent=1 // pred_check_branch
      %16 = sbr.rel (0) target = $region13
    $region12: #{tpu_custom_call.1} parent=1 // pred_region
      _
    $region13: #{tpu_custom_call.1} parent=1 // pred_fallthru
      _
    // Predicated region
    $region14: #{tpu_custom_call.1} parent=1 // pred_check
      _
    $region15: #{tpu_custom_call.1} parent=1 // pred_check_branch
      %18 = sbr.rel (0) target = $region17
    $region16: #{tpu_custom_call.1} parent=1 // pred_region
      _
    $region17: #{tpu_custom_call.1} parent=1 // pred_fallthru
      _
    // Predicated region
    $region18: #{tpu_custom_call.1} parent=1 // pred_check
      _
    $region19: #{tpu_custom_call.1} parent=1 // pred_check_branch
      %20 = sbr.rel (0) target = $region21
    $region20: #{tpu_custom_call.1} parent=1 // pred_region
      _
    $region21: #{tpu_custom_call.1} parent=1 // pred_fallthru
      _
    %v21 = vld [vmem:[%s0] sm:$0x3]
    %v22 = vld [vmem:[%s0 + $0x2] sm:$0x3]
    %v23 = vld [vmem:[%s0 + $0x4] sm:$0x3]
    %v24 = vld [vmem:[%s0 + $0x6] sm:$0x3]
    %v25 = vld [vmem:[%s0 + $0x8] sm:$0x3]
    %v26 = vld [vmem:[%s0 + $0xa] sm:$0x3]
    %v27 = vld [vmem:[%s0 + $0xc] sm:$0x3]
    %v28 = vld [vmem:[%s0 + $0xe] sm:$0x3]
    %v29 = vld [vmem:[%s4] sm:$0x1]
    %v30 = vld [vmem:[%s1] sm:$0xff]
    %v31 = vld [vmem:[%s1 + $0x8] sm:$0xff]
    %v32 = vld [vmem:[%s1 + $0x10] sm:$0xff]
    %v33 = vld [vmem:[%s1 + $0x18] sm:$0xff]
    %v34 = vperm.slane %v29, 0
    %43 = vst [vmem:[#allocation1] ss:$4 sm:$0xff] %v21
    %s44 = scalar_lea.vmem [#allocation1], 1
    %45 = vst [vmem:[%s44] ss:$4 sm:$0xff] %v22
    %s46 = scalar_lea.vmem [#allocation1], 2
    %47 = vst [vmem:[%s46] ss:$4 sm:$0xff] %v23
    %s48 = scalar_lea.vmem [#allocation1], 3
    %49 = vst [vmem:[%s48] ss:$4 sm:$0xff] %v24
    %s50 = scalar_lea.vmem [#allocation1], 32
    %51 = vst [vmem:[%s50] ss:$4 sm:$0xff] %v25
    %s52 = scalar_lea.vmem [#allocation1], 33
    %53 = vst [vmem:[%s52] ss:$4 sm:$0xff] %v26
    %s54 = scalar_lea.vmem [#allocation1], 34
    %55 = vst [vmem:[%s54] ss:$4 sm:$0xff] %v27
    %s56 = scalar_lea.vmem [#allocation1], 35
    %57 = vst [vmem:[%s56] ss:$4 sm:$0xff] %v28
    %v58 = vld.sshfl [vmem:[#allocation1] sm:$0xff pattern:$0x73625140]
    %v59 = vld.sshfl [vmem:[#allocation1 + $0x20] sm:$0xff pattern:$0x73625140]
    %vm60 = vcmask 261120
    %v61 = vsel %vm60, %v58, 0
    %v63 = vsel %vm60, %v59, 0
    %65 = vmatpush.msra.mxu0 0.0
    %66 = vmatpush.msra.mxu0 0.0
    %67 = vmatpush.msra.mxu0 0.0
    %68 = vmatpush.msra.mxu0 0.0
    %69 = vmatpush.msra.mxu0 0.0
    %70 = vmatpush.msra.mxu0 0.0
    %71 = vmatpush.msra.mxu0 0.0
    %72 = vmatpush.msra.mxu0 0.0
    %73 = vmatpush.msra.mxu0 0.0
    %74 = vmatpush.msra.mxu0 0.0
    %75 = vmatpush.msra.mxu0 0.0
    %76 = vmatpush.msra.mxu0 0.0
    %77 = vmatpush.msra.mxu0 %v33
    %78 = vmatpush.msra.mxu0 %v32
    %79 = vmatpush.msra.mxu0 %v31
    %80 = vmatpush.msra.mxu0 %v30
    %81 = vmatmul.f32.gmra.mxu0 %v61
    %v82 = vpop.f32.mrf.mxu0
    %v83 = vadd.f32 %v34, %v82
    %84 = vmatmul.f32.gmra.mxu0 %v63
    %v85 = vpop.f32.mrf.mxu0
    %v86 = vadd.f32 %v34, %v85
    %87 = vdwg.mxu0
    %v88 = vld [vmem:[%s2] sm:$0xff]
    %v89 = vld [vmem:[%s2 + $0x8] sm:$0xff]
    %v90 = vld [vmem:[%s2 + $0x10] sm:$0xff]
    %v91 = vld [vmem:[%s2 + $0x18] sm:$0xff]
    %v92 = vld [vmem:[%s3] sm:$0xff]
    %v93 = vld [vmem:[%s3 + $0x8] sm:$0xff]
    %v94 = vld [vmem:[%s3 + $0x10] sm:$0xff]
    %v95 = vld [vmem:[%s3 + $0x18] sm:$0xff]
    %v96 = vld [vmem:[%s3 + $0x20] sm:$0xff]
    %v97 = vld [vmem:[%s3 + $0x28] sm:$0xff]
    %v98 = vld [vmem:[%s3 + $0x30] sm:$0xff]
    %v99 = vld [vmem:[%s3 + $0x38] sm:$0xff]
    %v100 = vld [vmem:[%s4 + $0x1] sm:$0x1]
    %v102 = vsel %vm60, 0.0, 0
    %104 = vmatpush.msra.mxu0 0.0
    %105 = vmatpush.msra.mxu0 0.0
    %106 = vmatpush.msra.mxu0 0.0
    %107 = vmatpush.msra.mxu0 0.0
    %108 = vmatpush.msra.mxu0 0.0
    %109 = vmatpush.msra.mxu0 0.0
    %110 = vmatpush.msra.mxu0 0.0
    %111 = vmatpush.msra.mxu0 0.0
    %112 = vmatpush.msra.mxu0 0.0
    %113 = vmatpush.msra.mxu0 0.0
    %114 = vmatpush.msra.mxu0 0.0
    %115 = vmatpush.msra.mxu0 0.0
    %116 = vmatpush.msra.mxu0 %v91
    %117 = vmatpush.msra.mxu0 %v90
    %118 = vmatpush.msra.mxu0 %v89
    %119 = vmatpush.msra.mxu0 %v88
    %120 = vmatmul.f32.gmra.mxu0 %v102
    %v121 = vpop.f32.mrf.mxu0
    %v122 = vadd.f32 0.0, %v121
    %123 = vdwg.mxu0
    %v124 = vperm.slane %v100, 0
    %125 = vmatpush.msra.mxu0 0.0
    %126 = vmatpush.msra.mxu0 0.0
    %127 = vmatpush.msra.mxu0 0.0
    %128 = vmatpush.msra.mxu0 0.0
    %129 = vmatpush.msra.mxu0 0.0
    %130 = vmatpush.msra.mxu0 0.0
    %131 = vmatpush.msra.mxu0 0.0
    %132 = vmatpush.msra.mxu0 0.0
    %133 = vmatpush.msra.mxu0 0.0
    %134 = vmatpush.msra.mxu0 0.0
    %135 = vmatpush.msra.mxu0 0.0
    %136 = vmatpush.msra.mxu0 0.0
    %137 = vmatpush.msra.mxu0 %v95
    %138 = vmatpush.msra.mxu0 %v94
    %139 = vmatpush.msra.mxu0 %v93
    %140 = vmatpush.msra.mxu0 %v92
    %141 = vmatmul.f32.gmra.mxu0 %v102
    %v142 = vpop.f32.mrf.mxu0
    %v143 = vadd.f32 %v124, %v142
    %144 = vdwg.mxu0
    %v145 = vadd.f32 %v83, %v122
    %v146 = vxor.u32 %v145, 2147483648
    %v147 = vmul.f32 %v146, 1.442695
    %v148 = vpow.pop %v147
    %v149 = vadd.f32 %v148, 1.0
    %v150 = vrcp.pop %v149
    %v151 = vmul.f32 %v149, %v150
    %v152 = vsub.f32 1.0, %v151
    %v153 = vmul.f32 %v150, %v152
    %v154 = vadd.f32 %v150, %v153
    %vm155 = vweird.f32 %v149
    %vm156 = vweird.f32 %v150
    %vm157 = vmor %vm155, %vm156
    %v158 = vsel %vm157, %v150, %v154
    %v159 = vand.u32 2147483647, %v149
    %vm160 = vcmp.eq.f32.partialorder %v159, 8.507059e+37
    %v161 = vand.u32 %v149, 2147483648
    %v162 = vor.u32 1.1754944e-38, %v161
    %v163 = vsel %vm160, %v162, %v158
    %v164 = vmul.f32 1.0, %v163
    %v165 = vmul.f32 %v164, %v143
    %167 = vrot.lane.b32.xlu0 %v165, 64
    %v168 = vpop.permute.xlu0 %167
    %v170 = vadd.f32 %v83, %v168
    %v171 = vtanh.pop %v170
    %v172 = vsub.f32 1.0, %v164
    %174 = vrot.lane.b32.xlu0 %v171, 96
    %v175 = vpop.permute.xlu0 %174
    %v177 = vmul.f32 %v172, %v175
    %v178 = vmul.f32 %v164, 0.0
    %v179 = vadd.f32 %v177, %v178
    %181 = vrot.lane.b32.xlu0 %v179, 96
    %v182 = vpop.permute.xlu0 %181
    %v183 = vsel %vm60, %v182, 0
    %185 = vmatpush.msra.mxu0 0.0
    %186 = vmatpush.msra.mxu0 0.0
    %187 = vmatpush.msra.mxu0 0.0
    %188 = vmatpush.msra.mxu0 0.0
    %189 = vmatpush.msra.mxu0 0.0
    %190 = vmatpush.msra.mxu0 0.0
    %191 = vmatpush.msra.mxu0 0.0
    %192 = vmatpush.msra.mxu0 0.0
    %193 = vmatpush.msra.mxu0 0.0
    %194 = vmatpush.msra.mxu0 0.0
    %195 = vmatpush.msra.mxu0 0.0
    %196 = vmatpush.msra.mxu0 0.0
    %197 = vmatpush.msra.mxu0 %v91
    %198 = vmatpush.msra.mxu0 %v90
    %199 = vmatpush.msra.mxu0 %v89
    %200 = vmatpush.msra.mxu0 %v88
    %201 = vmatmul.f32.gmra.mxu0 %v183
    %v202 = vpop.f32.mrf.mxu0
    %v203 = vadd.f32 0.0, %v202
    %204 = vdwg.mxu0
    %205 = vmatpush.msra.mxu0 0.0
    %206 = vmatpush.msra.mxu0 0.0
    %207 = vmatpush.msra.mxu0 0.0
    %208 = vmatpush.msra.mxu0 0.0
    %209 = vmatpush.msra.mxu0 0.0
    %210 = vmatpush.msra.mxu0 0.0
    %211 = vmatpush.msra.mxu0 0.0
    %212 = vmatpush.msra.mxu0 0.0
    %213 = vmatpush.msra.mxu0 0.0
    %214 = vmatpush.msra.mxu0 0.0
    %215 = vmatpush.msra.mxu0 0.0
    %216 = vmatpush.msra.mxu0 0.0
    %217 = vmatpush.msra.mxu0 %v95
    %218 = vmatpush.msra.mxu0 %v94
    %219 = vmatpush.msra.mxu0 %v93
    %220 = vmatpush.msra.mxu0 %v92
    %221 = vmatmul.f32.gmra.mxu0 %v183
    %v222 = vpop.f32.mrf.mxu0
    %v223 = vadd.f32 %v124, %v222
    %224 = vdwg.mxu0
    %v226 = vrot.slane %v203, 6
    %v228 = vadd.f32 %v83, %v226
    %v229 = vxor.u32 %v228, 2147483648
    %v230 = vmul.f32 %v229, 1.442695
    %v231 = vpow.pop %v230
    %v232 = vadd.f32 %v231, 1.0
    %v233 = vrcp.pop %v232
    %v234 = vmul.f32 %v232, %v233
    %v235 = vsub.f32 1.0, %v234
    %v236 = vmul.f32 %v233, %v235
    %v237 = vadd.f32 %v233, %v236
    %vm238 = vweird.f32 %v232
    %vm239 = vweird.f32 %v233
    %vm240 = vmor %vm238, %vm239
    %v241 = vsel %vm240, %v233, %v237
    %v242 = vand.u32 2147483647, %v232
    %vm243 = vcmp.eq.f32.partialorder %v242, 8.507059e+37
    %v244 = vand.u32 %v232, 2147483648
    %v245 = vor.u32 1.1754944e-38, %v244
    %v246 = vsel %vm243, %v245, %v241
    %v247 = vmul.f32 1.0, %v246
    %v249 = vrot.slane %v223, 6
    %v251 = vmul.f32 %v247, %v249
    %253 = vrot.lane.b32.xlu0 %v251, 64
    %v254 = vpop.permute.xlu0 %253
    %v256 = vadd.f32 %v83, %v254
    %v257 = vtanh.pop %v256
    %v258 = vsub.f32 1.0, %v247
    %260 = vrot.lane.b32.xlu0 %v257, 96
    %v261 = vpop.permute.xlu0 %260
    %v263 = vmul.f32 %v258, %v261
    %v264 = vrot.slane %v179, 6
    %v266 = vmul.f32 %v247, %v264
    %v267 = vadd.f32 %v263, %v266
    %v269 = vrot.slane %v267, 2
    %270 = vrot.lane.b32.xlu0 %v269, 96
    %v271 = vpop.permute.xlu0 %270
    %v272 = vsel %vm60, %v271, 0
    %274 = vmatpush.msra.mxu0 0.0
    %275 = vmatpush.msra.mxu0 0.0
    %276 = vmatpush.msra.mxu0 0.0
    %277 = vmatpush.msra.mxu0 0.0
    %278 = vmatpush.msra.mxu0 0.0
    %279 = vmatpush.msra.mxu0 0.0
    %280 = vmatpush.msra.mxu0 0.0
    %281 = vmatpush.msra.mxu0 0.0
    %282 = vmatpush.msra.mxu0 0.0
    %283 = vmatpush.msra.mxu0 0.0
    %284 = vmatpush.msra.mxu0 0.0
    %285 = vmatpush.msra.mxu0 0.0
    %286 = vmatpush.msra.mxu0 %v91
    %287 = vmatpush.msra.mxu0 %v90
    %288 = vmatpush.msra.mxu0 %v89
    %289 = vmatpush.msra.mxu0 %v88
    %290 = vmatmul.f32.gmra.mxu0 %v272
    %v291 = vpop.f32.mrf.mxu0
    %v292 = vadd.f32 0.0, %v291
    %293 = vdwg.mxu0
    %294 = vmatpush.msra.mxu0 0.0
    %295 = vmatpush.msra.mxu0 0.0
    %296 = vmatpush.msra.mxu0 0.0
    %297 = vmatpush.msra.mxu0 0.0
    %298 = vmatpush.msra.mxu0 0.0
    %299 = vmatpush.msra.mxu0 0.0
    %300 = vmatpush.msra.mxu0 0.0
    %301 = vmatpush.msra.mxu0 0.0
    %302 = vmatpush.msra.mxu0 0.0
    %303 = vmatpush.msra.mxu0 0.0
    %304 = vmatpush.msra.mxu0 0.0
    %305 = vmatpush.msra.mxu0 0.0
    %306 = vmatpush.msra.mxu0 %v95
    %307 = vmatpush.msra.mxu0 %v94
    %308 = vmatpush.msra.mxu0 %v93
    %309 = vmatpush.msra.mxu0 %v92
    %310 = vmatmul.f32.gmra.mxu0 %v272
    %v311 = vpop.f32.mrf.mxu0
    %v312 = vadd.f32 %v124, %v311
    %313 = vdwg.mxu0
    %v315 = vrot.slane %v292, 4
    %v317 = vadd.f32 %v83, %v315
    %v318 = vxor.u32 %v317, 2147483648
    %v319 = vmul.f32 %v318, 1.442695
    %v320 = vpow.pop %v319
    %v321 = vadd.f32 %v320, 1.0
    %v322 = vrcp.pop %v321
    %v323 = vmul.f32 %v321, %v322
    %v324 = vsub.f32 1.0, %v323
    %v325 = vmul.f32 %v322, %v324
    %v326 = vadd.f32 %v322, %v325
    %vm327 = vweird.f32 %v321
    %vm328 = vweird.f32 %v322
    %vm329 = vmor %vm327, %vm328
    %v330 = vsel %vm329, %v322, %v326
    %v331 = vand.u32 2147483647, %v321
    %vm332 = vcmp.eq.f32.partialorder %v331, 8.507059e+37
    %v333 = vand.u32 %v321, 2147483648
    %v334 = vor.u32 1.1754944e-38, %v333
    %v335 = vsel %vm332, %v334, %v330
    %v336 = vmul.f32 1.0, %v335
    %v338 = vrot.slane %v312, 4
    %v340 = vmul.f32 %v336, %v338
    %342 = vrot.lane.b32.xlu0 %v340, 64
    %v343 = vpop.permute.xlu0 %342
    %v345 = vadd.f32 %v83, %v343
    %v346 = vtanh.pop %v345
    %v347 = vsub.f32 1.0, %v336
    %349 = vrot.lane.b32.xlu0 %v346, 96
    %v350 = vpop.permute.xlu0 %349
    %v352 = vmul.f32 %v347, %v350
    %v353 = vrot.slane %v267, 6
    %v355 = vmul.f32 %v336, %v353
    %v356 = vadd.f32 %v352, %v355
    %v358 = vrot.slane %v356, 4
    %359 = vrot.lane.b32.xlu0 %v358, 96
    %v360 = vpop.permute.xlu0 %359
    %v361 = vsel %vm60, %v360, 0
    %363 = vmatpush.msra.mxu0 0.0
    %364 = vmatpush.msra.mxu0 0.0
    %365 = vmatpush.msra.mxu0 0.0
    %366 = vmatpush.msra.mxu0 0.0
    %367 = vmatpush.msra.mxu0 0.0
    %368 = vmatpush.msra.mxu0 0.0
    %369 = vmatpush.msra.mxu0 0.0
    %370 = vmatpush.msra.mxu0 0.0
    %371 = vmatpush.msra.mxu0 0.0
    %372 = vmatpush.msra.mxu0 0.0
    %373 = vmatpush.msra.mxu0 0.0
    %374 = vmatpush.msra.mxu0 0.0
    %375 = vmatpush.msra.mxu0 %v91
    %376 = vmatpush.msra.mxu0 %v90
    %377 = vmatpush.msra.mxu0 %v89
    %378 = vmatpush.msra.mxu0 %v88
    %379 = vmatmul.f32.gmra.mxu0 %v361
    %v380 = vpop.f32.mrf.mxu0
    %v381 = vadd.f32 0.0, %v380
    %382 = vdwg.mxu0
    %383 = vmatpush.msra.mxu0 0.0
    %384 = vmatpush.msra.mxu0 0.0
    %385 = vmatpush.msra.mxu0 0.0
    %386 = vmatpush.msra.mxu0 0.0
    %387 = vmatpush.msra.mxu0 0.0
    %388 = vmatpush.msra.mxu0 0.0
    %389 = vmatpush.msra.mxu0 0.0
    %390 = vmatpush.msra.mxu0 0.0
    %391 = vmatpush.msra.mxu0 0.0
    %392 = vmatpush.msra.mxu0 0.0
    %393 = vmatpush.msra.mxu0 0.0
    %394 = vmatpush.msra.mxu0 0.0
    %395 = vmatpush.msra.mxu0 %v95
    %396 = vmatpush.msra.mxu0 %v94
    %397 = vmatpush.msra.mxu0 %v93
    %398 = vmatpush.msra.mxu0 %v92
    %399 = vmatmul.f32.gmra.mxu0 %v361
    %v400 = vpop.f32.mrf.mxu0
    %v401 = vadd.f32 %v124, %v400
    %402 = vdwg.mxu0
    %v404 = vrot.slane %v381, 2
    %v406 = vadd.f32 %v83, %v404
    %v407 = vxor.u32 %v406, 2147483648
    %v408 = vmul.f32 %v407, 1.442695
    %v409 = vpow.pop %v408
    %v410 = vadd.f32 %v409, 1.0
    %v411 = vrcp.pop %v410
    %v412 = vmul.f32 %v410, %v411
    %v413 = vsub.f32 1.0, %v412
    %v414 = vmul.f32 %v411, %v413
    %v415 = vadd.f32 %v411, %v414
    %vm416 = vweird.f32 %v410
    %vm417 = vweird.f32 %v411
    %vm418 = vmor %vm416, %vm417
    %v419 = vsel %vm418, %v411, %v415
    %v420 = vand.u32 2147483647, %v410
    %vm421 = vcmp.eq.f32.partialorder %v420, 8.507059e+37
    %v422 = vand.u32 %v410, 2147483648
    %v423 = vor.u32 1.1754944e-38, %v422
    %v424 = vsel %vm421, %v423, %v419
    %v425 = vmul.f32 1.0, %v424
    %v427 = vrot.slane %v401, 2
    %v429 = vmul.f32 %v425, %v427
    %431 = vrot.lane.b32.xlu0 %v429, 64
    %v432 = vpop.permute.xlu0 %431
    %v434 = vadd.f32 %v83, %v432
    %v435 = vtanh.pop %v434
    %v436 = vsub.f32 1.0, %v425
    %438 = vrot.lane.b32.xlu0 %v435, 96
    %v439 = vpop.permute.xlu0 %438
    %v441 = vmul.f32 %v436, %v439
    %v442 = vrot.slane %v356, 6
    %v444 = vmul.f32 %v425, %v442
    %v445 = vadd.f32 %v441, %v444
    %v447 = vrot.slane %v445, 6
    %448 = vrot.lane.b32.xlu0 %v447, 96
    %v449 = vpop.permute.xlu0 %448
    %v450 = vsel %vm60, %v449, 0
    %452 = vmatpush.msra.mxu0 0.0
    %453 = vmatpush.msra.mxu0 0.0
    %454 = vmatpush.msra.mxu0 0.0
    %455 = vmatpush.msra.mxu0 0.0
    %456 = vmatpush.msra.mxu0 0.0
    %457 = vmatpush.msra.mxu0 0.0
    %458 = vmatpush.msra.mxu0 0.0
    %459 = vmatpush.msra.mxu0 0.0
    %460 = vmatpush.msra.mxu0 0.0
    %461 = vmatpush.msra.mxu0 0.0
    %462 = vmatpush.msra.mxu0 0.0
    %463 = vmatpush.msra.mxu0 0.0
    %464 = vmatpush.msra.mxu0 %v91
    %465 = vmatpush.msra.mxu0 %v90
    %466 = vmatpush.msra.mxu0 %v89
    %467 = vmatpush.msra.mxu0 %v88
    %468 = vmatmul.f32.gmra.mxu0 %v450
    %v469 = vpop.f32.mrf.mxu0
    %v470 = vadd.f32 0.0, %v469
    %471 = vdwg.mxu0
    %472 = vmatpush.msra.mxu0 0.0
    %473 = vmatpush.msra.mxu0 0.0
    %474 = vmatpush.msra.mxu0 0.0
    %475 = vmatpush.msra.mxu0 0.0
    %476 = vmatpush.msra.mxu0 0.0
    %477 = vmatpush.msra.mxu0 0.0
    %478 = vmatpush.msra.mxu0 0.0
    %479 = vmatpush.msra.mxu0 0.0
    %480 = vmatpush.msra.mxu0 0.0
    %481 = vmatpush.msra.mxu0 0.0
    %482 = vmatpush.msra.mxu0 0.0
    %483 = vmatpush.msra.mxu0 0.0
    %484 = vmatpush.msra.mxu0 %v95
    %485 = vmatpush.msra.mxu0 %v94
    %486 = vmatpush.msra.mxu0 %v93
    %487 = vmatpush.msra.mxu0 %v92
    %488 = vmatmul.f32.gmra.mxu0 %v450
    %v489 = vpop.f32.mrf.mxu0
    %v490 = vadd.f32 %v124, %v489
    %491 = vdwg.mxu0
    %v492 = vadd.f32 %v86, %v470
    %v493 = vxor.u32 %v492, 2147483648
    %v494 = vmul.f32 %v493, 1.442695
    %v495 = vpow.pop %v494
    %v496 = vadd.f32 %v495, 1.0
    %v497 = vrcp.pop %v496
    %v498 = vmul.f32 %v496, %v497
    %v499 = vsub.f32 1.0, %v498
    %v500 = vmul.f32 %v497, %v499
    %v501 = vadd.f32 %v497, %v500
    %vm502 = vweird.f32 %v496
    %vm503 = vweird.f32 %v497
    %vm504 = vmor %vm502, %vm503
    %v505 = vsel %vm504, %v497, %v501
    %v506 = vand.u32 2147483647, %v496
    %vm507 = vcmp.eq.f32.partialorder %v506, 8.507059e+37
    %v508 = vand.u32 %v496, 2147483648
    %v509 = vor.u32 1.1754944e-38, %v508
    %v510 = vsel %vm507, %v509, %v505
    %v511 = vmul.f32 1.0, %v510
    %v512 = vmul.f32 %v511, %v490
    %514 = vrot.lane.b32.xlu0 %v512, 64
    %v515 = vpop.permute.xlu0 %514
    %v517 = vadd.f32 %v86, %v515
    %v518 = vtanh.pop %v517
    %v519 = vsub.f32 1.0, %v511
    %521 = vrot.lane.b32.xlu0 %v518, 96
    %v522 = vpop.permute.xlu0 %521
    %v524 = vmul.f32 %v519, %v522
    %v526 = vmul.f32 %v511, %v447
    %v527 = vadd.f32 %v524, %v526
    %529 = vrot.lane.b32.xlu0 %v527, 96
    %v530 = vpop.permute.xlu0 %529
    %v531 = vsel %vm60, %v530, 0
    %533 = vmatpush.msra.mxu0 0.0
    %534 = vmatpush.msra.mxu0 0.0
    %535 = vmatpush.msra.mxu0 0.0
    %536 = vmatpush.msra.mxu0 0.0
    %537 = vmatpush.msra.mxu0 0.0
    %538 = vmatpush.msra.mxu0 0.0
    %539 = vmatpush.msra.mxu0 0.0
    %540 = vmatpush.msra.mxu0 0.0
    %541 = vmatpush.msra.mxu0 0.0
    %542 = vmatpush.msra.mxu0 0.0
    %543 = vmatpush.msra.mxu0 0.0
    %544 = vmatpush.msra.mxu0 0.0
    %545 = vmatpush.msra.mxu0 %v91
    %546 = vmatpush.msra.mxu0 %v90
    %547 = vmatpush.msra.mxu0 %v89
    %548 = vmatpush.msra.mxu0 %v88
    %549 = vmatmul.f32.gmra.mxu0 %v531
    %v550 = vpop.f32.mrf.mxu0
    %v551 = vadd.f32 0.0, %v550
    %552 = vdwg.mxu0
    %553 = vmatpush.msra.mxu0 0.0
    %554 = vmatpush.msra.mxu0 0.0
    %555 = vmatpush.msra.mxu0 0.0
    %556 = vmatpush.msra.mxu0 0.0
    %557 = vmatpush.msra.mxu0 0.0
    %558 = vmatpush.msra.mxu0 0.0
    %559 = vmatpush.msra.mxu0 0.0
    %560 = vmatpush.msra.mxu0 0.0
    %561 = vmatpush.msra.mxu0 0.0
    %562 = vmatpush.msra.mxu0 0.0
    %563 = vmatpush.msra.mxu0 0.0
    %564 = vmatpush.msra.mxu0 0.0
    %565 = vmatpush.msra.mxu0 %v95
    %566 = vmatpush.msra.mxu0 %v94
    %567 = vmatpush.msra.mxu0 %v93
    %568 = vmatpush.msra.mxu0 %v92
    %569 = vmatmul.f32.gmra.mxu0 %v531
    %v570 = vpop.f32.mrf.mxu0
    %v571 = vadd.f32 %v124, %v570
    %572 = vdwg.mxu0
    %v574 = vrot.slane %v551, 6
    %v576 = vadd.f32 %v86, %v574
    %v577 = vxor.u32 %v576, 2147483648
    %v578 = vmul.f32 %v577, 1.442695
    %v579 = vpow.pop %v578
    %v580 = vadd.f32 %v579, 1.0
    %v581 = vrcp.pop %v580
    %v582 = vmul.f32 %v580, %v581
    %v583 = vsub.f32 1.0, %v582
    %v584 = vmul.f32 %v581, %v583
    %v585 = vadd.f32 %v581, %v584
    %vm586 = vweird.f32 %v580
    %vm587 = vweird.f32 %v581
    %vm588 = vmor %vm586, %vm587
    %v589 = vsel %vm588, %v581, %v585
    %v590 = vand.u32 2147483647, %v580
    %vm591 = vcmp.eq.f32.partialorder %v590, 8.507059e+37
    %v592 = vand.u32 %v580, 2147483648
    %v593 = vor.u32 1.1754944e-38, %v592
    %v594 = vsel %vm591, %v593, %v589
    %v595 = vmul.f32 1.0, %v594
    %v597 = vrot.slane %v571, 6
    %v599 = vmul.f32 %v595, %v597
    %601 = vrot.lane.b32.xlu0 %v599, 64
    %v602 = vpop.permute.xlu0 %601
    %v604 = vadd.f32 %v86, %v602
    %v605 = vtanh.pop %v604
    %v606 = vsub.f32 1.0, %v595
    %608 = vrot.lane.b32.xlu0 %v605, 96
    %v609 = vpop.permute.xlu0 %608
    %v611 = vmul.f32 %v606, %v609
    %v612 = vrot.slane %v527, 6
    %v614 = vmul.f32 %v595, %v612
    %v615 = vadd.f32 %v611, %v614
    %v617 = vrot.slane %v615, 2
    %618 = vrot.lane.b32.xlu0 %v617, 96
    %v619 = vpop.permute.xlu0 %618
    %v620 = vsel %vm60, %v619, 0
    %622 = vmatpush.msra.mxu0 0.0
    %623 = vmatpush.msra.mxu0 0.0
    %624 = vmatpush.msra.mxu0 0.0
    %625 = vmatpush.msra.mxu0 0.0
    %626 = vmatpush.msra.mxu0 0.0
    %627 = vmatpush.msra.mxu0 0.0
    %628 = vmatpush.msra.mxu0 0.0
    %629 = vmatpush.msra.mxu0 0.0
    %630 = vmatpush.msra.mxu0 0.0
    %631 = vmatpush.msra.mxu0 0.0
    %632 = vmatpush.msra.mxu0 0.0
    %633 = vmatpush.msra.mxu0 0.0
    %634 = vmatpush.msra.mxu0 %v91
    %635 = vmatpush.msra.mxu0 %v90
    %636 = vmatpush.msra.mxu0 %v89
    %637 = vmatpush.msra.mxu0 %v88
    %638 = vmatmul.f32.gmra.mxu0 %v620
    %v639 = vpop.f32.mrf.mxu0
    %v640 = vadd.f32 0.0, %v639
    %641 = vdwg.mxu0
    %642 = vmatpush.msra.mxu0 0.0
    %643 = vmatpush.msra.mxu0 0.0
    %644 = vmatpush.msra.mxu0 0.0
    %645 = vmatpush.msra.mxu0 0.0
    %646 = vmatpush.msra.mxu0 0.0
    %647 = vmatpush.msra.mxu0 0.0
    %648 = vmatpush.msra.mxu0 0.0
    %649 = vmatpush.msra.mxu0 0.0
    %650 = vmatpush.msra.mxu0 0.0
    %651 = vmatpush.msra.mxu0 0.0
    %652 = vmatpush.msra.mxu0 0.0
    %653 = vmatpush.msra.mxu0 0.0
    %654 = vmatpush.msra.mxu0 %v95
    %655 = vmatpush.msra.mxu0 %v94
    %656 = vmatpush.msra.mxu0 %v93
    %657 = vmatpush.msra.mxu0 %v92
    %658 = vmatmul.f32.gmra.mxu0 %v620
    %v659 = vpop.f32.mrf.mxu0
    %v660 = vadd.f32 %v124, %v659
    %661 = vdwg.mxu0
    %v663 = vrot.slane %v640, 4
    %v665 = vadd.f32 %v86, %v663
    %v666 = vxor.u32 %v665, 2147483648
    %v667 = vmul.f32 %v666, 1.442695
    %v668 = vpow.pop %v667
    %v669 = vadd.f32 %v668, 1.0
    %v670 = vrcp.pop %v669
    %v671 = vmul.f32 %v669, %v670
    %v672 = vsub.f32 1.0, %v671
    %v673 = vmul.f32 %v670, %v672
    %v674 = vadd.f32 %v670, %v673
    %vm675 = vweird.f32 %v669
    %vm676 = vweird.f32 %v670
    %vm677 = vmor %vm675, %vm676
    %v678 = vsel %vm677, %v670, %v674
    %v679 = vand.u32 2147483647, %v669
    %vm680 = vcmp.eq.f32.partialorder %v679, 8.507059e+37
    %v681 = vand.u32 %v669, 2147483648
    %v682 = vor.u32 1.1754944e-38, %v681
    %v683 = vsel %vm680, %v682, %v678
    %v684 = vmul.f32 1.0, %v683
    %v686 = vrot.slane %v660, 4
    %v688 = vmul.f32 %v684, %v686
    %690 = vrot.lane.b32.xlu0 %v688, 64
    %v691 = vpop.permute.xlu0 %690
    %v693 = vadd.f32 %v86, %v691
    %v694 = vtanh.pop %v693
    %v695 = vsub.f32 1.0, %v684
    %697 = vrot.lane.b32.xlu0 %v694, 96
    %v698 = vpop.permute.xlu0 %697
    %v700 = vmul.f32 %v695, %v698
    %v701 = vrot.slane %v615, 6
    %v703 = vmul.f32 %v684, %v701
    %v704 = vadd.f32 %v700, %v703
    %v706 = vrot.slane %v704, 4
    %707 = vrot.lane.b32.xlu0 %v706, 96
    %v708 = vpop.permute.xlu0 %707
    %v709 = vsel %vm60, %v708, 0
    %711 = vmatpush.msra.mxu0 0.0
    %712 = vmatpush.msra.mxu0 0.0
    %713 = vmatpush.msra.mxu0 0.0
    %714 = vmatpush.msra.mxu0 0.0
    %715 = vmatpush.msra.mxu0 0.0
    %716 = vmatpush.msra.mxu0 0.0
    %717 = vmatpush.msra.mxu0 0.0
    %718 = vmatpush.msra.mxu0 0.0
    %719 = vmatpush.msra.mxu0 0.0
    %720 = vmatpush.msra.mxu0 0.0
    %721 = vmatpush.msra.mxu0 0.0
    %722 = vmatpush.msra.mxu0 0.0
    %723 = vmatpush.msra.mxu0 %v91
    %724 = vmatpush.msra.mxu0 %v90
    %725 = vmatpush.msra.mxu0 %v89
    %726 = vmatpush.msra.mxu0 %v88
    %727 = vmatmul.f32.gmra.mxu0 %v709
    %v728 = vpop.f32.mrf.mxu0
    %v729 = vadd.f32 0.0, %v728
    %730 = vdwg.mxu0
    %731 = vmatpush.msra.mxu0 0.0
    %732 = vmatpush.msra.mxu0 0.0
    %733 = vmatpush.msra.mxu0 0.0
    %734 = vmatpush.msra.mxu0 0.0
    %735 = vmatpush.msra.mxu0 0.0
    %736 = vmatpush.msra.mxu0 0.0
    %737 = vmatpush.msra.mxu0 0.0
    %738 = vmatpush.msra.mxu0 0.0
    %739 = vmatpush.msra.mxu0 0.0
    %740 = vmatpush.msra.mxu0 0.0
    %741 = vmatpush.msra.mxu0 0.0
    %742 = vmatpush.msra.mxu0 0.0
    %743 = vmatpush.msra.mxu0 %v95
    %744 = vmatpush.msra.mxu0 %v94
    %745 = vmatpush.msra.mxu0 %v93
    %746 = vmatpush.msra.mxu0 %v92
    %747 = vmatmul.f32.gmra.mxu0 %v709
    %v748 = vpop.f32.mrf.mxu0
    %v749 = vadd.f32 %v124, %v748
    %750 = vdwg.mxu0
    %v752 = vrot.slane %v729, 2
    %v754 = vadd.f32 %v86, %v752
    %v755 = vxor.u32 %v754, 2147483648
    %v756 = vmul.f32 %v755, 1.442695
    %v757 = vpow.pop %v756
    %v758 = vadd.f32 %v757, 1.0
    %v759 = vrcp.pop %v758
    %v760 = vmul.f32 %v758, %v759
    %v761 = vsub.f32 1.0, %v760
    %v762 = vmul.f32 %v759, %v761
    %v763 = vadd.f32 %v759, %v762
    %vm764 = vweird.f32 %v758
    %vm765 = vweird.f32 %v759
    %vm766 = vmor %vm764, %vm765
    %v767 = vsel %vm766, %v759, %v763
    %v768 = vand.u32 2147483647, %v758
    %vm769 = vcmp.eq.f32.partialorder %v768, 8.507059e+37
    %v770 = vand.u32 %v758, 2147483648
    %v771 = vor.u32 1.1754944e-38, %v770
    %v772 = vsel %vm769, %v771, %v767
    %v773 = vmul.f32 1.0, %v772
    %v775 = vrot.slane %v749, 2
    %v777 = vmul.f32 %v773, %v775
    %779 = vrot.lane.b32.xlu0 %v777, 64
    %v780 = vpop.permute.xlu0 %779
    %v782 = vadd.f32 %v86, %v780
    %v783 = vtanh.pop %v782
    %v784 = vsub.f32 1.0, %v773
    %786 = vrot.lane.b32.xlu0 %v783, 96
    %v787 = vpop.permute.xlu0 %786
    %v789 = vmul.f32 %v784, %v787
    %v790 = vrot.slane %v704, 6
    %v792 = vmul.f32 %v773, %v790
    %v793 = vadd.f32 %v789, %v792
    %v795 = vrot.slane %v793, 6
    %796 = vrot.lane.b32.xlu0 %v795, 96
    %v797 = vpop.permute.xlu0 %796
    %799 = vrot.lane.b32.xlu0 %v124, 96
    %v800 = vpop.permute.xlu0 %799
    %v802 = vsel %vm60, %v797, 0
    %804 = vmatpush.msra.mxu0 0.0
    %805 = vmatpush.msra.mxu0 0.0
    %806 = vmatpush.msra.mxu0 0.0
    %807 = vmatpush.msra.mxu0 0.0
    %808 = vmatpush.msra.mxu0 0.0
    %809 = vmatpush.msra.mxu0 0.0
    %810 = vmatpush.msra.mxu0 0.0
    %811 = vmatpush.msra.mxu0 0.0
    %812 = vmatpush.msra.mxu0 0.0
    %813 = vmatpush.msra.mxu0 0.0
    %814 = vmatpush.msra.mxu0 0.0
    %815 = vmatpush.msra.mxu0 0.0
    %816 = vmatpush.msra.mxu0 %v99
    %817 = vmatpush.msra.mxu0 %v98
    %818 = vmatpush.msra.mxu0 %v97
    %819 = vmatpush.msra.mxu0 %v96
    %820 = vmatmul.f32.gmra.mxu0 %v802
    %v821 = vpop.f32.mrf.mxu0
    %v822 = vadd.f32 %v800, %v821
    %823 = vdwg.mxu0
    %v824 = vtanh.pop %v822
    %vm825 = vcmask 254976
    %826 = vst.msk [vmem:[#allocation2] sm:$0x3] %vm825, %v824
    // Predicated region
    $region22: #{tpu_custom_call.1} parent=1 // pred_check
      _
    $region23: #{tpu_custom_call.1} parent=1 // pred_check_branch
      %828 = sbr.rel (0) target = $region25
    $region24: #{tpu_custom_call.1} parent=1 // pred_region
      %830 = vsyncadd [#allocation3], 0
      %s832 = sshll.u32 [#allocation2], 4
      %s833 = int_to_ptr.vmem [resolvable:$true] %s832
      %s834 = sshll.u32 %s5, 4
      %s835 = int_to_ptr.hbm [resolvable:$true] %s834
      %837 = dma.vmem_to_hbm [thread:$0]  %s833, 32, %s835, [#allocation3]
    $region25: #{tpu_custom_call.1} parent=1 // pred_fallthru
      _
    // Predicated region
    $region26: #{tpu_custom_call.1} parent=1 // pred_check
      _
    $region27: #{tpu_custom_call.1} parent=1 // pred_check_branch
      %839 = sbr.rel (0) target = $region29
    $region28: #{tpu_custom_call.1} parent=1 // pred_region
      %841 = dma.done [#allocation3], 32
    $region29: #{tpu_custom_call.1} parent=1 // pred_fallthru
      _
    %842 = vsyncpa [#allocation3], 1

</llo_original>
